<compile_context>
chip_gen: v5e
topology: v5e:2x2
jax: 0.10.0
libtpu: 0.0.40
codegen_flags: <defaults>
</compile_context>

<pallas_src>
import jax
import jax.numpy as jnp
from jax import lax
from jax.experimental import pallas as pl
from jax.experimental.pallas import tpu as pltpu


# ----------------------------------------------------------------------------
# Pallas kernel: one grid step = one (batch, npoint-tile).
#   For every sample s: two bf16 matmuls (1x1 convs) + bias + ReLU, running
#   max over samples (f32, register-carried).  Then out_mlp matmul + bias +
#   ReLU and a single lane-dense (Co, M_tile) store.
# ----------------------------------------------------------------------------
def _sa_kernel(g_ref, w1_ref, b1_ref, w2_ref, b2_ref, wo_ref, bo_ref, out_ref):
    S = g_ref.shape[0]
    mt = out_ref.shape[-1]

    # Hoist weight loads and (H,1)->(H,M) bias broadcasts out of the loop.
    w1 = w1_ref[...]                                       # (H1, Cg)  bf16
    w2 = w2_ref[...]                                       # (H2, H1)  bf16
    wo = wo_ref[...]                                       # (Co, H2)  bf16
    b1 = jnp.broadcast_to(b1_ref[...], (w1.shape[0], mt))  # (H1, M)   f32
    b2 = jnp.broadcast_to(b2_ref[...], (w2.shape[0], mt))  # (H2, M)   f32
    bo = jnp.broadcast_to(bo_ref[...], (wo.shape[0], mt))  # (Co, M)   f32

    def mlp(x):                                            # x: (Cg, M) bf16
        h = jnp.dot(w1, x, preferred_element_type=jnp.float32) + b1
        h = jnp.maximum(h, 0.0).astype(w2.dtype)           # ReLU(conv1), bf16
        h = jnp.dot(w2, h, preferred_element_type=jnp.float32) + b2
        return jnp.maximum(h, 0.0)                         # ReLU(conv2), f32

    # First sample initializes the accumulator directly (no -inf fill).
    acc = mlp(g_ref[0])                                    # (H2, M) f32
    acc = lax.fori_loop(1, S,
                        lambda s, a: jnp.maximum(a, mlp(g_ref[s])),
                        acc, unroll=True)                  # max-pool over S

    o = jnp.dot(wo, acc.astype(wo.dtype),
                preferred_element_type=jnp.float32) + bo
    out_ref[...] = jnp.maximum(o, 0.0)                     # ReLU(out_mlp)


def run_scale(grouped_bscm, w1t, b1, w2t, b2, wot, bo, *, m_tile=128):
    """grouped_bscm: (B, nsample, Cg, npoint)  bf16, npoint on lanes.
    Weights are channels-first (out, in) bf16; biases (out, 1) f32.
    Returns (B, Cout, npoint) f32 (PyTorch layout)."""
    B, S, Cg, M = grouped_bscm.shape
    H1, H2, Co = w1t.shape[0], w2t.shape[0], wot.shape[0]
    if M % m_tile != 0:
        m_tile = M
    full = lambda b, m: (0, 0)

    return pl.pallas_call(
        _sa_kernel,
        out_shape=jax.ShapeDtypeStruct((B, Co, M), jnp.float32),
        grid_spec=pltpu.PrefetchScalarGridSpec(
            num_scalar_prefetch=0,
            grid=(B, M // m_tile),
            in_specs=[
                # grouped points: squeeze batch dim -> (S, Cg, M_tile)
                pl.BlockSpec((None, S, Cg, m_tile), lambda b, m: (b, 0, 0, m)),
                pl.BlockSpec((H1, Cg), full),   # mlp conv1 weight
                pl.BlockSpec((H1, 1), full),    # mlp conv1 bias
                pl.BlockSpec((H2, H1), full),   # mlp conv2 weight
                pl.BlockSpec((H2, 1), full),    # mlp conv2 bias
                pl.BlockSpec((Co, H2), full),   # out_mlp weight
                pl.BlockSpec((Co, 1), full),    # out_mlp bias
            ],
            out_specs=pl.BlockSpec((None, Co, m_tile), lambda b, m: (b, 0, m)),
        ),
        compiler_params=pltpu.CompilerParams(
            dimension_semantics=("parallel", "parallel"),
            vmem_limit_bytes=32 * 1024 * 1024),
    )(grouped_bscm, w1t, b1, w2t, b2, wot, bo)


# ----------------------------------------------------------------------------
# Glue (plain JAX): ball-query grouping (data-dependent gather).
# ----------------------------------------------------------------------------
def ball_query_and_group(xyz, new_xyz, features, radius, nsample):
    """xyz (B,N,3), new_xyz (B,M,3), features (B,N,C) ->
       grouped (B, nsample, 3+C, M): channels-first, npoint on lanes."""
    B, N, _ = xyz.shape
    d2 = jnp.sum((new_xyz[:, :, None, :] - xyz[:, None, :, :]) ** 2, axis=-1)
    mask = d2 < (radius * radius)                                   # (B,M,N)
    sort_key = jnp.where(mask, jnp.arange(N)[None, None, :], N)
    idx = jnp.argsort(sort_key, axis=-1)[..., :nsample]             # (B,M,S)
    cnt = mask.sum(axis=-1, keepdims=True)                          # (B,M,1)
    idx = jnp.where(jnp.arange(nsample)[None, None, :] < cnt, idx, idx[..., :1])

    gather = jax.vmap(lambda arr, i: arr[i])                        # per-batch
    g_xyz = gather(xyz, idx) - new_xyz[:, :, None, :]               # (B,M,S,3)
    g_feat = gather(features, idx)                                  # (B,M,S,C)
    grouped = jnp.concatenate([g_xyz, g_feat], axis=-1)             # (B,M,S,Cg)
    return jnp.transpose(grouped, (0, 2, 3, 1))                     # (B,S,Cg,M)


def sa_module_forward(xyz, features, radii, nsamples, params):
    """Mirrors _PointnetSAModuleBaseOrigin.forward with npoint == N.
    Returns (new_xyz (B,npoint,3), new_features (B, sum_k Cout_k, npoint))."""
    new_xyz = xyz  # npoint == N  ->  fps is identity
    feats = []
    for radius, nsample, p in zip(radii, nsamples, params):
        grouped = ball_query_and_group(xyz, new_xyz, features, radius, nsample)
        feats.append(run_scale(grouped.astype(jnp.bfloat16), *p))  # (B,Co,M)
    return new_xyz, jnp.concatenate(feats, axis=1)


# ----------------------------------------------------------------------------
# Pure-JAX references (matched-precision and f32) for validation.
# ----------------------------------------------------------------------------
def _ref_scale(grouped_bscm, w1t, b1, w2t, b2, wot, bo, compute_dtype):
    g = grouped_bscm.astype(compute_dtype)                       # (B,S,Cg,M)
    h = jnp.einsum('hc,bscm->bshm', w1t.astype(compute_dtype), g,
                   preferred_element_type=jnp.float32)
    h = jnp.maximum(h + b1, 0.0).astype(compute_dtype)
    h = jnp.einsum('kh,bshm->bskm', w2t.astype(compute_dtype), h,
                   preferred_element_type=jnp.float32)
    h = jnp.maximum(h + b2, 0.0)                                 # (B,S,H2,M)
    pooled = jnp.max(h, axis=1)                                  # (B,H2,M)
    o = jnp.einsum('ok,bkm->bom', wot.astype(compute_dtype),
                   pooled.astype(compute_dtype),
                   preferred_element_type=jnp.float32)
    return jnp.maximum(o + bo, 0.0)                              # (B,Co,M)


if __name__ == "__main__":
    key = jax.random.PRNGKey(0)

    # Small deterministic problem (npoint kept 128-lane aligned).
    B, N, Cf = 2, 128, 4
    npoint = N                       # identity-FPS branch of the module
    radii = [0.3, 0.5]
    nsamples = [8, 16]
    Cg = 3 + Cf                      # use_xyz=True
    H1, H2, Co = 16, 32, 32

    k_xyz, k_feat, k_w = jax.random.split(key, 3)
    xyz = jax.random.uniform(k_xyz, (B, N, 3), dtype=jnp.float32)
    features = jax.random.normal(k_feat, (B, N, Cf), dtype=jnp.float32)

    # Deterministic parameters for both scales (mlps[k] + out_mlps[k]).
    # Weights channels-first (out, in) in bf16; biases (out, 1) in f32.
    params = []
    for k in range(len(radii)):
        ks = jax.random.split(jax.random.fold_in(k_w, k), 3)
        w1 = (0.1 * jax.random.normal(ks[0], (H1, Cg), jnp.float32)).astype(jnp.bfloat16)
        b1 = jnp.full((H1, 1), 0.01, jnp.float32)
        w2 = (0.1 * jax.random.normal(ks[1], (H2, H1), jnp.float32)).astype(jnp.bfloat16)
        b2 = jnp.full((H2, 1), 0.01, jnp.float32)
        wo = (0.1 * jax.random.normal(ks[2], (Co, H2), jnp.float32)).astype(jnp.bfloat16)
        bo = jnp.full((Co, 1), 0.01, jnp.float32)
        params.append((w1, b1, w2, b2, wo, bo))

    new_xyz, new_features = jax.block_until_ready(
        sa_module_forward(xyz, features, radii, nsamples, params))

    assert new_xyz.shape == (B, npoint, 3)
    assert new_features.shape == (B, 2 * Co, npoint)

    # Validate the Pallas hot path: exact against a matched-precision
    # (bf16 matmul inputs, f32 accumulation) reference, loose against f32.
    refs_bf, refs_f32 = [], []
    for radius, nsample, p in zip(radii, nsamples, params):
        grouped = ball_query_and_group(xyz, xyz, features, radius, nsample)
        refs_bf.append(_ref_scale(grouped, *p, compute_dtype=jnp.bfloat16))
        refs_f32.append(_ref_scale(grouped, *p, compute_dtype=jnp.float32))
    ref_bf = jnp.concatenate(refs_bf, axis=1)
    ref_f32 = jnp.concatenate(refs_f32, axis=1)

    assert jnp.allclose(new_features, ref_bf, rtol=1e-3, atol=1e-3)
    assert jnp.allclose(new_features, ref_f32, rtol=5e-2, atol=5e-2)

    print("KERNEL_OK")
</pallas_src>

<mosaic_0001>
module attributes {stable_mosaic.version = 11 : i64} {
  func.func @_sa_kernel(%arg0: i32, %arg1: i32, %arg2: memref<1x8x7x128xbf16, #tpu.memory_space<vmem>>, %arg3: memref<16x7xbf16, #tpu.memory_space<vmem>>, %arg4: memref<16x1xf32, #tpu.memory_space<vmem>>, %arg5: memref<32x16xbf16, #tpu.memory_space<vmem>>, %arg6: memref<32x1xf32, #tpu.memory_space<vmem>>, %arg7: memref<32x32xbf16, #tpu.memory_space<vmem>>, %arg8: memref<32x1xf32, #tpu.memory_space<vmem>>, %arg9: memref<1x32x128xf32, #tpu.memory_space<vmem>>) attributes {dimension_semantics = [#tpu.dimension_semantics<parallel>, #tpu.dimension_semantics<parallel>], iteration_bounds = array<i64: 2, 1>, scalar_prefetch = 0 : i64, scratch_operands = 0 : i64, tpu.core_type = #tpu.core_type<tc>, window_params = [{transform_indices = @transform_0, window_bounds = array<i64: 1, 8, 7, 128>}, {pipeline_mode = #tpu.pipeline_mode<synchronous>, transform_indices = @transform_1, window_bounds = array<i64: 16, 7>}, {pipeline_mode = #tpu.pipeline_mode<synchronous>, transform_indices = @transform_2, window_bounds = array<i64: 16, 1>}, {pipeline_mode = #tpu.pipeline_mode<synchronous>, transform_indices = @transform_3, window_bounds = array<i64: 32, 16>}, {pipeline_mode = #tpu.pipeline_mode<synchronous>, transform_indices = @transform_4, window_bounds = array<i64: 32, 1>}, {pipeline_mode = #tpu.pipeline_mode<synchronous>, transform_indices = @transform_5, window_bounds = array<i64: 32, 32>}, {pipeline_mode = #tpu.pipeline_mode<synchronous>, transform_indices = @transform_6, window_bounds = array<i64: 32, 1>}, {transform_indices = @transform_7, window_bounds = array<i64: 1, 32, 128>}]} {
    %c0 = arith.constant 0 : index
    %c0_0 = arith.constant 0 : index
    %0 = vector.load %arg3[%c0, %c0_0] : memref<16x7xbf16, #tpu.memory_space<vmem>>, vector<16x7xbf16>
    %c0_1 = arith.constant 0 : index
    %c0_2 = arith.constant 0 : index
    %1 = vector.load %arg5[%c0_1, %c0_2] : memref<32x16xbf16, #tpu.memory_space<vmem>>, vector<32x16xbf16>
    %c0_3 = arith.constant 0 : index
    %c0_4 = arith.constant 0 : index
    %2 = vector.load %arg7[%c0_3, %c0_4] : memref<32x32xbf16, #tpu.memory_space<vmem>>, vector<32x32xbf16>
    %c0_5 = arith.constant 0 : index
    %c0_6 = arith.constant 0 : index
    %3 = vector.load %arg4[%c0_5, %c0_6] : memref<16x1xf32, #tpu.memory_space<vmem>>, vector<16x1xf32>
    %4 = vector.shape_cast %3 : vector<16x1xf32> to vector<16x1xf32>
    %5 = vector.broadcast %4 : vector<16x1xf32> to vector<16x128xf32>
    %c0_7 = arith.constant 0 : index
    %c0_8 = arith.constant 0 : index
    %6 = vector.load %arg6[%c0_7, %c0_8] : memref<32x1xf32, #tpu.memory_space<vmem>>, vector<32x1xf32>
    %7 = vector.shape_cast %6 : vector<32x1xf32> to vector<32x1xf32>
    %8 = vector.broadcast %7 : vector<32x1xf32> to vector<32x128xf32>
    %c0_9 = arith.constant 0 : index
    %c0_10 = arith.constant 0 : index
    %9 = vector.load %arg8[%c0_9, %c0_10] : memref<32x1xf32, #tpu.memory_space<vmem>>, vector<32x1xf32>
    %10 = vector.shape_cast %9 : vector<32x1xf32> to vector<32x1xf32>
    %11 = vector.broadcast %10 : vector<32x1xf32> to vector<32x128xf32>
    %c0_11 = arith.constant 0 : index
    %c0_12 = arith.constant 0 : index
    %c0_13 = arith.constant 0 : index
    %c0_14 = arith.constant 0 : index
    %12 = vector.load %arg2[%c0_11, %c0_12, %c0_13, %c0_14] : memref<1x8x7x128xbf16, #tpu.memory_space<vmem>>, vector<1x1x7x128xbf16>
    %13 = vector.shape_cast %12 : vector<1x1x7x128xbf16> to vector<7x128xbf16>
    %cst = arith.constant dense<0.000000e+00> : vector<16x128xf32>
    %14 = tpu.matmul %0, %13, %cst {dimension_numbers = #tpu.dot_dimension_numbers<[1], [0], [0], [1], [0, 0, 1, 1], [], []>} : vector<16x7xbf16>, vector<7x128xbf16>, vector<16x128xf32> -> vector<16x128xf32>
    %15 = arith.addf %14, %5 : vector<16x128xf32>
    %cst_15 = arith.constant 0.000000e+00 : f32
    %16 = vector.broadcast %cst_15 : f32 to vector<16x128xf32>
    %17 = arith.maximumf %15, %16 : vector<16x128xf32>
    %18 = arith.truncf %17 : vector<16x128xf32> to vector<16x128xbf16>
    %cst_16 = arith.constant dense<0.000000e+00> : vector<32x128xf32>
    %19 = tpu.matmul %1, %18, %cst_16 {dimension_numbers = #tpu.dot_dimension_numbers<[1], [0], [0], [1], [0, 0, 1, 1], [], []>} : vector<32x16xbf16>, vector<16x128xbf16>, vector<32x128xf32> -> vector<32x128xf32>
    %20 = arith.addf %19, %8 : vector<32x128xf32>
    %cst_17 = arith.constant 0.000000e+00 : f32
    %21 = vector.broadcast %cst_17 : f32 to vector<32x128xf32>
    %22 = arith.maximumf %20, %21 : vector<32x128xf32>
    %c1_i32 = arith.constant 1 : i32
    %c0_18 = arith.constant 0 : index
    %23 = arith.index_cast %c1_i32 : i32 to index
    %c0_19 = arith.constant 0 : index
    %c0_20 = arith.constant 0 : index
    %24 = vector.load %arg2[%c0_18, %23, %c0_19, %c0_20] : memref<1x8x7x128xbf16, #tpu.memory_space<vmem>>, vector<1x1x7x128xbf16>
    %25 = vector.shape_cast %24 : vector<1x1x7x128xbf16> to vector<7x128xbf16>
    %cst_21 = arith.constant dense<0.000000e+00> : vector<16x128xf32>
    %26 = tpu.matmul %0, %25, %cst_21 {dimension_numbers = #tpu.dot_dimension_numbers<[1], [0], [0], [1], [0, 0, 1, 1], [], []>} : vector<16x7xbf16>, vector<7x128xbf16>, vector<16x128xf32> -> vector<16x128xf32>
    %27 = arith.addf %26, %5 : vector<16x128xf32>
    %cst_22 = arith.constant 0.000000e+00 : f32
    %28 = vector.broadcast %cst_22 : f32 to vector<16x128xf32>
    %29 = arith.maximumf %27, %28 : vector<16x128xf32>
    %30 = arith.truncf %29 : vector<16x128xf32> to vector<16x128xbf16>
    %cst_23 = arith.constant dense<0.000000e+00> : vector<32x128xf32>
    %31 = tpu.matmul %1, %30, %cst_23 {dimension_numbers = #tpu.dot_dimension_numbers<[1], [0], [0], [1], [0, 0, 1, 1], [], []>} : vector<32x16xbf16>, vector<16x128xbf16>, vector<32x128xf32> -> vector<32x128xf32>
    %32 = arith.addf %31, %8 : vector<32x128xf32>
    %cst_24 = arith.constant 0.000000e+00 : f32
    %33 = vector.broadcast %cst_24 : f32 to vector<32x128xf32>
    %34 = arith.maximumf %32, %33 : vector<32x128xf32>
    %35 = arith.maximumf %22, %34 : vector<32x128xf32>
    %c2_i32 = arith.constant 2 : i32
    %c0_25 = arith.constant 0 : index
    %36 = arith.index_cast %c2_i32 : i32 to index
    %c0_26 = arith.constant 0 : index
    %c0_27 = arith.constant 0 : index
    %37 = vector.load %arg2[%c0_25, %36, %c0_26, %c0_27] : memref<1x8x7x128xbf16, #tpu.memory_space<vmem>>, vector<1x1x7x128xbf16>
    %38 = vector.shape_cast %37 : vector<1x1x7x128xbf16> to vector<7x128xbf16>
    %cst_28 = arith.constant dense<0.000000e+00> : vector<16x128xf32>
    %39 = tpu.matmul %0, %38, %cst_28 {dimension_numbers = #tpu.dot_dimension_numbers<[1], [0], [0], [1], [0, 0, 1, 1], [], []>} : vector<16x7xbf16>, vector<7x128xbf16>, vector<16x128xf32> -> vector<16x128xf32>
    %40 = arith.addf %39, %5 : vector<16x128xf32>
    %cst_29 = arith.constant 0.000000e+00 : f32
    %41 = vector.broadcast %cst_29 : f32 to vector<16x128xf32>
    %42 = arith.maximumf %40, %41 : vector<16x128xf32>
    %43 = arith.truncf %42 : vector<16x128xf32> to vector<16x128xbf16>
    %cst_30 = arith.constant dense<0.000000e+00> : vector<32x128xf32>
    %44 = tpu.matmul %1, %43, %cst_30 {dimension_numbers = #tpu.dot_dimension_numbers<[1], [0], [0], [1], [0, 0, 1, 1], [], []>} : vector<32x16xbf16>, vector<16x128xbf16>, vector<32x128xf32> -> vector<32x128xf32>
    %45 = arith.addf %44, %8 : vector<32x128xf32>
    %cst_31 = arith.constant 0.000000e+00 : f32
    %46 = vector.broadcast %cst_31 : f32 to vector<32x128xf32>
    %47 = arith.maximumf %45, %46 : vector<32x128xf32>
    %48 = arith.maximumf %35, %47 : vector<32x128xf32>
    %c3_i32 = arith.constant 3 : i32
    %c0_32 = arith.constant 0 : index
    %49 = arith.index_cast %c3_i32 : i32 to index
    %c0_33 = arith.constant 0 : index
    %c0_34 = arith.constant 0 : index
    %50 = vector.load %arg2[%c0_32, %49, %c0_33, %c0_34] : memref<1x8x7x128xbf16, #tpu.memory_space<vmem>>, vector<1x1x7x128xbf16>
    %51 = vector.shape_cast %50 : vector<1x1x7x128xbf16> to vector<7x128xbf16>
    %cst_35 = arith.constant dense<0.000000e+00> : vector<16x128xf32>
    %52 = tpu.matmul %0, %51, %cst_35 {dimension_numbers = #tpu.dot_dimension_numbers<[1], [0], [0], [1], [0, 0, 1, 1], [], []>} : vector<16x7xbf16>, vector<7x128xbf16>, vector<16x128xf32> -> vector<16x128xf32>
    %53 = arith.addf %52, %5 : vector<16x128xf32>
    %cst_36 = arith.constant 0.000000e+00 : f32
    %54 = vector.broadcast %cst_36 : f32 to vector<16x128xf32>
    %55 = arith.maximumf %53, %54 : vector<16x128xf32>
    %56 = arith.truncf %55 : vector<16x128xf32> to vector<16x128xbf16>
    %cst_37 = arith.constant dense<0.000000e+00> : vector<32x128xf32>
    %57 = tpu.matmul %1, %56, %cst_37 {dimension_numbers = #tpu.dot_dimension_numbers<[1], [0], [0], [1], [0, 0, 1, 1], [], []>} : vector<32x16xbf16>, vector<16x128xbf16>, vector<32x128xf32> -> vector<32x128xf32>
    %58 = arith.addf %57, %8 : vector<32x128xf32>
    %cst_38 = arith.constant 0.000000e+00 : f32
    %59 = vector.broadcast %cst_38 : f32 to vector<32x128xf32>
    %60 = arith.maximumf %58, %59 : vector<32x128xf32>
    %61 = arith.maximumf %48, %60 : vector<32x128xf32>
    %c4_i32 = arith.constant 4 : i32
    %c0_39 = arith.constant 0 : index
    %62 = arith.index_cast %c4_i32 : i32 to index
    %c0_40 = arith.constant 0 : index
    %c0_41 = arith.constant 0 : index
    %63 = vector.load %arg2[%c0_39, %62, %c0_40, %c0_41] : memref<1x8x7x128xbf16, #tpu.memory_space<vmem>>, vector<1x1x7x128xbf16>
    %64 = vector.shape_cast %63 : vector<1x1x7x128xbf16> to vector<7x128xbf16>
    %cst_42 = arith.constant dense<0.000000e+00> : vector<16x128xf32>
    %65 = tpu.matmul %0, %64, %cst_42 {dimension_numbers = #tpu.dot_dimension_numbers<[1], [0], [0], [1], [0, 0, 1, 1], [], []>} : vector<16x7xbf16>, vector<7x128xbf16>, vector<16x128xf32> -> vector<16x128xf32>
    %66 = arith.addf %65, %5 : vector<16x128xf32>
    %cst_43 = arith.constant 0.000000e+00 : f32
    %67 = vector.broadcast %cst_43 : f32 to vector<16x128xf32>
    %68 = arith.maximumf %66, %67 : vector<16x128xf32>
    %69 = arith.truncf %68 : vector<16x128xf32> to vector<16x128xbf16>
    %cst_44 = arith.constant dense<0.000000e+00> : vector<32x128xf32>
    %70 = tpu.matmul %1, %69, %cst_44 {dimension_numbers = #tpu.dot_dimension_numbers<[1], [0], [0], [1], [0, 0, 1, 1], [], []>} : vector<32x16xbf16>, vector<16x128xbf16>, vector<32x128xf32> -> vector<32x128xf32>
    %71 = arith.addf %70, %8 : vector<32x128xf32>
    %cst_45 = arith.constant 0.000000e+00 : f32
    %72 = vector.broadcast %cst_45 : f32 to vector<32x128xf32>
    %73 = arith.maximumf %71, %72 : vector<32x128xf32>
    %74 = arith.maximumf %61, %73 : vector<32x128xf32>
    %c5_i32 = arith.constant 5 : i32
    %c0_46 = arith.constant 0 : index
    %75 = arith.index_cast %c5_i32 : i32 to index
    %c0_47 = arith.constant 0 : index
    %c0_48 = arith.constant 0 : index
    %76 = vector.load %arg2[%c0_46, %75, %c0_47, %c0_48] : memref<1x8x7x128xbf16, #tpu.memory_space<vmem>>, vector<1x1x7x128xbf16>
    %77 = vector.shape_cast %76 : vector<1x1x7x128xbf16> to vector<7x128xbf16>
    %cst_49 = arith.constant dense<0.000000e+00> : vector<16x128xf32>
    %78 = tpu.matmul %0, %77, %cst_49 {dimension_numbers = #tpu.dot_dimension_numbers<[1], [0], [0], [1], [0, 0, 1, 1], [], []>} : vector<16x7xbf16>, vector<7x128xbf16>, vector<16x128xf32> -> vector<16x128xf32>
    %79 = arith.addf %78, %5 : vector<16x128xf32>
    %cst_50 = arith.constant 0.000000e+00 : f32
    %80 = vector.broadcast %cst_50 : f32 to vector<16x128xf32>
    %81 = arith.maximumf %79, %80 : vector<16x128xf32>
    %82 = arith.truncf %81 : vector<16x128xf32> to vector<16x128xbf16>
    %cst_51 = arith.constant dense<0.000000e+00> : vector<32x128xf32>
    %83 = tpu.matmul %1, %82, %cst_51 {dimension_numbers = #tpu.dot_dimension_numbers<[1], [0], [0], [1], [0, 0, 1, 1], [], []>} : vector<32x16xbf16>, vector<16x128xbf16>, vector<32x128xf32> -> vector<32x128xf32>
    %84 = arith.addf %83, %8 : vector<32x128xf32>
    %cst_52 = arith.constant 0.000000e+00 : f32
    %85 = vector.broadcast %cst_52 : f32 to vector<32x128xf32>
    %86 = arith.maximumf %84, %85 : vector<32x128xf32>
    %87 = arith.maximumf %74, %86 : vector<32x128xf32>
    %c6_i32 = arith.constant 6 : i32
    %c0_53 = arith.constant 0 : index
    %88 = arith.index_cast %c6_i32 : i32 to index
    %c0_54 = arith.constant 0 : index
    %c0_55 = arith.constant 0 : index
    %89 = vector.load %arg2[%c0_53, %88, %c0_54, %c0_55] : memref<1x8x7x128xbf16, #tpu.memory_space<vmem>>, vector<1x1x7x128xbf16>
    %90 = vector.shape_cast %89 : vector<1x1x7x128xbf16> to vector<7x128xbf16>
    %cst_56 = arith.constant dense<0.000000e+00> : vector<16x128xf32>
    %91 = tpu.matmul %0, %90, %cst_56 {dimension_numbers = #tpu.dot_dimension_numbers<[1], [0], [0], [1], [0, 0, 1, 1], [], []>} : vector<16x7xbf16>, vector<7x128xbf16>, vector<16x128xf32> -> vector<16x128xf32>
    %92 = arith.addf %91, %5 : vector<16x128xf32>
    %cst_57 = arith.constant 0.000000e+00 : f32
    %93 = vector.broadcast %cst_57 : f32 to vector<16x128xf32>
    %94 = arith.maximumf %92, %93 : vector<16x128xf32>
    %95 = arith.truncf %94 : vector<16x128xf32> to vector<16x128xbf16>
    %cst_58 = arith.constant dense<0.000000e+00> : vector<32x128xf32>
    %96 = tpu.matmul %1, %95, %cst_58 {dimension_numbers = #tpu.dot_dimension_numbers<[1], [0], [0], [1], [0, 0, 1, 1], [], []>} : vector<32x16xbf16>, vector<16x128xbf16>, vector<32x128xf32> -> vector<32x128xf32>
    %97 = arith.addf %96, %8 : vector<32x128xf32>
    %cst_59 = arith.constant 0.000000e+00 : f32
    %98 = vector.broadcast %cst_59 : f32 to vector<32x128xf32>
    %99 = arith.maximumf %97, %98 : vector<32x128xf32>
    %100 = arith.maximumf %87, %99 : vector<32x128xf32>
    %c7_i32 = arith.constant 7 : i32
    %c0_60 = arith.constant 0 : index
    %101 = arith.index_cast %c7_i32 : i32 to index
    %c0_61 = arith.constant 0 : index
    %c0_62 = arith.constant 0 : index
    %102 = vector.load %arg2[%c0_60, %101, %c0_61, %c0_62] : memref<1x8x7x128xbf16, #tpu.memory_space<vmem>>, vector<1x1x7x128xbf16>
    %103 = vector.shape_cast %102 : vector<1x1x7x128xbf16> to vector<7x128xbf16>
    %cst_63 = arith.constant dense<0.000000e+00> : vector<16x128xf32>
    %104 = tpu.matmul %0, %103, %cst_63 {dimension_numbers = #tpu.dot_dimension_numbers<[1], [0], [0], [1], [0, 0, 1, 1], [], []>} : vector<16x7xbf16>, vector<7x128xbf16>, vector<16x128xf32> -> vector<16x128xf32>
    %105 = arith.addf %104, %5 : vector<16x128xf32>
    %cst_64 = arith.constant 0.000000e+00 : f32
    %106 = vector.broadcast %cst_64 : f32 to vector<16x128xf32>
    %107 = arith.maximumf %105, %106 : vector<16x128xf32>
    %108 = arith.truncf %107 : vector<16x128xf32> to vector<16x128xbf16>
    %cst_65 = arith.constant dense<0.000000e+00> : vector<32x128xf32>
    %109 = tpu.matmul %1, %108, %cst_65 {dimension_numbers = #tpu.dot_dimension_numbers<[1], [0], [0], [1], [0, 0, 1, 1], [], []>} : vector<32x16xbf16>, vector<16x128xbf16>, vector<32x128xf32> -> vector<32x128xf32>
    %110 = arith.addf %109, %8 : vector<32x128xf32>
    %cst_66 = arith.constant 0.000000e+00 : f32
    %111 = vector.broadcast %cst_66 : f32 to vector<32x128xf32>
    %112 = arith.maximumf %110, %111 : vector<32x128xf32>
    %113 = arith.maximumf %100, %112 : vector<32x128xf32>
    %c7_i32_67 = arith.constant 7 : i32
    %114 = arith.truncf %113 : vector<32x128xf32> to vector<32x128xbf16>
    %cst_68 = arith.constant dense<0.000000e+00> : vector<32x128xf32>
    %115 = tpu.matmul %2, %114, %cst_68 {dimension_numbers = #tpu.dot_dimension_numbers<[1], [0], [0], [1], [0, 0, 1, 1], [], []>} : vector<32x32xbf16>, vector<32x128xbf16>, vector<32x128xf32> -> vector<32x128xf32>
    %116 = arith.addf %115, %11 : vector<32x128xf32>
    %cst_69 = arith.constant 0.000000e+00 : f32
    %117 = vector.broadcast %cst_69 : f32 to vector<32x128xf32>
    %118 = arith.maximumf %116, %117 : vector<32x128xf32>
    %c0_70 = arith.constant 0 : index
    %c0_71 = arith.constant 0 : index
    %c0_72 = arith.constant 0 : index
    %119 = vector.load %arg9[%c0_70, %c0_71, %c0_72] : memref<1x32x128xf32, #tpu.memory_space<vmem>>, vector<1x32x128xf32>
    %120 = vector.shape_cast %119 : vector<1x32x128xf32> to vector<32x128xf32>
    %121 = vector.shape_cast %118 : vector<32x128xf32> to vector<1x32x128xf32>
    tpu.vector_store %arg9[%c0_70, %c0_71, %c0_72], %121 {strides = array<i32>} : memref<1x32x128xf32, #tpu.memory_space<vmem>>, vector<1x32x128xf32>,
    return
  }
  func.func @transform_0(%arg0: i32, %arg1: i32) -> (i32, i32, i32, i32) {
    %c0_i32 = arith.constant 0 : i32
    %c0_i32_0 = arith.constant 0 : i32
    %c0_i32_1 = arith.constant 0 : i32
    return %arg0, %c0_i32, %c0_i32_0, %arg1 : i32, i32, i32, i32
  }
  func.func @transform_1(%arg0: i32, %arg1: i32) -> (i32, i32) {
    %c0_i32 = arith.constant 0 : i32
    %c0_i32_0 = arith.constant 0 : i32
    %c0_i32_1 = arith.constant 0 : i32
    return %c0_i32, %c0_i32_0 : i32, i32
  }
  func.func @transform_2(%arg0: i32, %arg1: i32) -> (i32, i32) {
    %c0_i32 = arith.constant 0 : i32
    %c0_i32_0 = arith.constant 0 : i32
    %c0_i32_1 = arith.constant 0 : i32
    return %c0_i32, %c0_i32_0 : i32, i32
  }
  func.func @transform_3(%arg0: i32, %arg1: i32) -> (i32, i32) {
    %c0_i32 = arith.constant 0 : i32
    %c0_i32_0 = arith.constant 0 : i32
    %c0_i32_1 = arith.constant 0 : i32
    return %c0_i32, %c0_i32_0 : i32, i32
  }
  func.func @transform_4(%arg0: i32, %arg1: i32) -> (i32, i32) {
    %c0_i32 = arith.constant 0 : i32
    %c0_i32_0 = arith.constant 0 : i32
    %c0_i32_1 = arith.constant 0 : i32
    return %c0_i32, %c0_i32_0 : i32, i32
  }
  func.func @transform_5(%arg0: i32, %arg1: i32) -> (i32, i32) {
    %c0_i32 = arith.constant 0 : i32
    %c0_i32_0 = arith.constant 0 : i32
    %c0_i32_1 = arith.constant 0 : i32
    return %c0_i32, %c0_i32_0 : i32, i32
  }
  func.func @transform_6(%arg0: i32, %arg1: i32) -> (i32, i32) {
    %c0_i32 = arith.constant 0 : i32
    %c0_i32_0 = arith.constant 0 : i32
    %c0_i32_1 = arith.constant 0 : i32
    return %c0_i32, %c0_i32_0 : i32, i32
  }
  func.func @transform_7(%arg0: i32, %arg1: i32) -> (i32, i32, i32) {
    %c0_i32 = arith.constant 0 : i32
    %c0_i32_0 = arith.constant 0 : i32
    return %arg0, %c0_i32, %arg1 : i32, i32, i32
  }
}

</mosaic_0001>

<llo_original>
// kernel: tpu_custom_call.1
$region0: #{tpu_custom_call.1}
  #allocation0 [shape = 'u32[]', space=smem, size = 0x4, offset = 0x4, fixed_abs, tag = 'smem constant byte address 0x4 - core index']
  #allocation1 [shape = 'u32[72,128]{1,0:T(1,128)}', space=vmem, size = 0x9000, scoped, tag = 'internal scratch']
  %s0 = inlined_call_operand.vmem [shape: bf16[2,8,7,128], index: 0, kind: input, shape index: {}]
  %s1 = inlined_call_operand.vmem [shape: bf16[16,7], index: 1, kind: input, shape index: {}]
  %s2 = inlined_call_operand.vmem [shape: f32[16,1], index: 2, kind: input, shape index: {}]
  %s3 = inlined_call_operand.vmem [shape: bf16[32,16], index: 3, kind: input, shape index: {}]
  %s4 = inlined_call_operand.vmem [shape: f32[32,1], index: 4, kind: input, shape index: {}]
  %s5 = inlined_call_operand.vmem [shape: bf16[32,32], index: 5, kind: input, shape index: {}]
  %s6 = inlined_call_operand.vmem [shape: f32[32,1], index: 6, kind: input, shape index: {}]
  %s7 = inlined_call_operand.hbm [shape: f32[2,32,128], index: 7, kind: output, shape index: {}]
  %s8 = sld [smem:[#allocation0]]
  $region61: #{tpu_custom_call.1} parent=0
    _
  %s10 = ssub.s32 1, %s8
  %s11 = scalar_select 0, %s10, %s8
  $region1: #{tpu_custom_call.1} parent=0
    #allocation2 [shape = 'u8[32768]{0}', space=vmem, size = 0x8000, scoped, tag = 'output window, operand 0']
    #allocation3 [shape = 's32[2]{0}', space=sflag, size = 0x8, scoped, tag = 'scoped memory for tpu_custom_call.1']
    %12 = vsyncpa [#allocation3], 0
    %s13 = scalar_lea.sflag [#allocation3], 1
    %14 = vsyncpa %s13, 0
    loop: start=0, step=1, limit=4
    $region2: #{tpu_custom_call.1} parent=1 // loop_pre_header
      _
    $region3: #{tpu_custom_call.1} parent=1 // loop_header
      %s16 = sphi 0, %s20
      %p17 = scmp.ge.s32.totalorder %s16, 4
      %s23 = sphi 0, %s35
      %s24 = sphi 0, %s31
      %s25 = sphi 0, %s23
      %s26 = sphi 0, %s24
      %s27 = sphi 0, %s25
      %s28 = sphi 0, %s26
      %s40 = sphi 0, %s42
      %s43 = sphi 0, %s40
      %s44 = sphi 0, %s43
      %s60 = sphi 0, %s44
      %s64 = sphi 0, %s64
      %s66 = sphi 0, %s64
      %s67 = sphi 0, %s66
      %s81 = sphi 0, %s67
      %s85 = sphi 0, %s85
      %s87 = sphi 0, %s85
      %s88 = sphi 0, %s87
      %s102 = sphi 0, %s88
      %s106 = sphi 0, %s106
      %s108 = sphi 0, %s106
      %s109 = sphi 0, %s108
      %s123 = sphi 0, %s109
      %s127 = sphi 0, %s127
      %s129 = sphi 0, %s127
      %s130 = sphi 0, %s129
      %s144 = sphi 0, %s130
      %s148 = sphi 0, %s148
      %s150 = sphi 0, %s148
      %s151 = sphi 0, %s150
      %s165 = sphi 0, %s151
      %s169 = sphi 0, %s169
      %s171 = sphi 0, %s169
      %s172 = sphi 0, %s171
      %s186 = sphi 0, %s172
      %s194 = sphi 0, %s196
      %s197 = sphi 0, %s194
      %s198 = sphi 0, %s197
      %s214 = sphi 0, %s198
    $region4: #{tpu_custom_call.1} parent=1 // loop_header_branch
      %19 = sbr.rel (%p17) target = $region8
    $region5: #{tpu_custom_call.1} parent=1 // loop_body
      %s21 = ssub.s32 %s16, 1
      %s22 = ssub.s32 %s16, 2
      %s29 = sadd.s32 1, %s24
      %p30 = scmp.ge.s32.totalorder %s29, 1
      %s31 = scalar_select %p30, 0, %s29
      %s32 = sadd.s32 1, %s23
      %s33 = scalar_select %p30, %s32, %s23
      %p34 = scmp.ge.s32.totalorder %s33, 2
      %s35 = scalar_select %p34, 0, %s33
      %s36 = ssub.s32 %s23, %s35
      %s37 = ssub.s32 %s24, %s31
      %s38 = sor.u32 %s36, %s37
      %p39 = scmp.eq.s32.totalorder %s38, 0
      %s41 = sadd.s32 %s40, 1
      %s42 = scalar_select %p39, %s40, %s41
      %p45 = pneg %p39
      %p46 = scmp.eq.s32.totalorder %s16, 1
      %p47 = por %p45, %p46
      %p48 = scmp.ne.s32.totalorder %s40, %s43
      %p49 = scmp.eq.s32.totalorder %s16, 0
      %p50 = por %p48, %p49
      %p51 = scmp.ne.s32.totalorder %s40, %s43
      %p52 = scmp.eq.s32.totalorder %s21, 1
      %p53 = por %p51, %p52
      %p54 = scmp.ne.s32.totalorder %s43, %s44
      %p55 = scmp.eq.s32.totalorder %s21, 0
      %p56 = por %p54, %p55
      %p57 = scmp.ne.s32.totalorder %s43, %s44
      %p58 = scmp.eq.s32.totalorder %s22, 1
      %p59 = por %p57, %p58
      %p61 = scmp.ne.s32.totalorder %s44, %s60
      %p62 = scmp.eq.s32.totalorder %s22, 0
      %p63 = por %p61, %p62
      %s65 = sadd.s32 %s64, 1
      %p68 = scmp.eq.s32.totalorder %s16, 1
      %p69 = scmp.ne.s32.totalorder %s64, %s66
      %p70 = scmp.eq.s32.totalorder %s16, 0
      %p71 = por %p69, %p70
      %p72 = scmp.ne.s32.totalorder %s64, %s66
      %p73 = scmp.eq.s32.totalorder %s21, 1
      %p74 = por %p72, %p73
      %p75 = scmp.ne.s32.totalorder %s66, %s67
      %p76 = scmp.eq.s32.totalorder %s21, 0
      %p77 = por %p75, %p76
      %p78 = scmp.ne.s32.totalorder %s66, %s67
      %p79 = scmp.eq.s32.totalorder %s22, 1
      %p80 = por %p78, %p79
      %p82 = scmp.ne.s32.totalorder %s67, %s81
      %p83 = scmp.eq.s32.totalorder %s22, 0
      %p84 = por %p82, %p83
      %s86 = sadd.s32 %s85, 1
      %p89 = scmp.eq.s32.totalorder %s16, 1
      %p90 = scmp.ne.s32.totalorder %s85, %s87
      %p91 = scmp.eq.s32.totalorder %s16, 0
      %p92 = por %p90, %p91
      %p93 = scmp.ne.s32.totalorder %s85, %s87
      %p94 = scmp.eq.s32.totalorder %s21, 1
      %p95 = por %p93, %p94
      %p96 = scmp.ne.s32.totalorder %s87, %s88
      %p97 = scmp.eq.s32.totalorder %s21, 0
      %p98 = por %p96, %p97
      %p99 = scmp.ne.s32.totalorder %s87, %s88
      %p100 = scmp.eq.s32.totalorder %s22, 1
      %p101 = por %p99, %p100
      %p103 = scmp.ne.s32.totalorder %s88, %s102
      %p104 = scmp.eq.s32.totalorder %s22, 0
      %p105 = por %p103, %p104
      %s107 = sadd.s32 %s106, 1
      %p110 = scmp.eq.s32.totalorder %s16, 1
      %p111 = scmp.ne.s32.totalorder %s106, %s108
      %p112 = scmp.eq.s32.totalorder %s16, 0
      %p113 = por %p111, %p112
      %p114 = scmp.ne.s32.totalorder %s106, %s108
      %p115 = scmp.eq.s32.totalorder %s21, 1
      %p116 = por %p114, %p115
      %p117 = scmp.ne.s32.totalorder %s108, %s109
      %p118 = scmp.eq.s32.totalorder %s21, 0
      %p119 = por %p117, %p118
      %p120 = scmp.ne.s32.totalorder %s108, %s109
      %p121 = scmp.eq.s32.totalorder %s22, 1
      %p122 = por %p120, %p121
      %p124 = scmp.ne.s32.totalorder %s109, %s123
      %p125 = scmp.eq.s32.totalorder %s22, 0
      %p126 = por %p124, %p125
      %s128 = sadd.s32 %s127, 1
      %p131 = scmp.eq.s32.totalorder %s16, 1
      %p132 = scmp.ne.s32.totalorder %s127, %s129
      %p133 = scmp.eq.s32.totalorder %s16, 0
      %p134 = por %p132, %p133
      %p135 = scmp.ne.s32.totalorder %s127, %s129
      %p136 = scmp.eq.s32.totalorder %s21, 1
      %p137 = por %p135, %p136
      %p138 = scmp.ne.s32.totalorder %s129, %s130
      %p139 = scmp.eq.s32.totalorder %s21, 0
      %p140 = por %p138, %p139
      %p141 = scmp.ne.s32.totalorder %s129, %s130
      %p142 = scmp.eq.s32.totalorder %s22, 1
      %p143 = por %p141, %p142
      %p145 = scmp.ne.s32.totalorder %s130, %s144
      %p146 = scmp.eq.s32.totalorder %s22, 0
      %p147 = por %p145, %p146
      %s149 = sadd.s32 %s148, 1
      %p152 = scmp.eq.s32.totalorder %s16, 1
      %p153 = scmp.ne.s32.totalorder %s148, %s150
      %p154 = scmp.eq.s32.totalorder %s16, 0
      %p155 = por %p153, %p154
      %p156 = scmp.ne.s32.totalorder %s148, %s150
      %p157 = scmp.eq.s32.totalorder %s21, 1
      %p158 = por %p156, %p157
      %p159 = scmp.ne.s32.totalorder %s150, %s151
      %p160 = scmp.eq.s32.totalorder %s21, 0
      %p161 = por %p159, %p160
      %p162 = scmp.ne.s32.totalorder %s150, %s151
      %p163 = scmp.eq.s32.totalorder %s22, 1
      %p164 = por %p162, %p163
      %p166 = scmp.ne.s32.totalorder %s151, %s165
      %p167 = scmp.eq.s32.totalorder %s22, 0
      %p168 = por %p166, %p167
      %s170 = sadd.s32 %s169, 1
      %p173 = scmp.eq.s32.totalorder %s16, 1
      %p174 = scmp.ne.s32.totalorder %s169, %s171
      %p175 = scmp.eq.s32.totalorder %s16, 0
      %p176 = por %p174, %p175
      %p177 = scmp.ne.s32.totalorder %s169, %s171
      %p178 = scmp.eq.s32.totalorder %s21, 1
      %p179 = por %p177, %p178
      %p180 = scmp.ne.s32.totalorder %s171, %s172
      %p181 = scmp.eq.s32.totalorder %s21, 0
      %p182 = por %p180, %p181
      %p183 = scmp.ne.s32.totalorder %s171, %s172
      %p184 = scmp.eq.s32.totalorder %s22, 1
      %p185 = por %p183, %p184
      %p187 = scmp.ne.s32.totalorder %s172, %s186
      %p188 = scmp.eq.s32.totalorder %s22, 0
      %p189 = por %p187, %p188
      %s190 = ssub.s32 %s23, %s35
      %s191 = ssub.s32 %s24, %s31
      %s192 = sor.u32 %s190, %s191
      %p193 = scmp.eq.s32.totalorder %s192, 0
      %s195 = sadd.s32 %s194, 1
      %s196 = scalar_select %p193, %s194, %s195
      %p199 = pneg %p193
      %p200 = scmp.eq.s32.totalorder %s16, 1
      %p201 = por %p199, %p200
      %p202 = scmp.ne.s32.totalorder %s194, %s197
      %p203 = scmp.eq.s32.totalorder %s16, 0
      %p204 = por %p202, %p203
      %p205 = scmp.ne.s32.totalorder %s194, %s197
      %p206 = scmp.eq.s32.totalorder %s21, 1
      %p207 = por %p205, %p206
      %p208 = scmp.ne.s32.totalorder %s197, %s198
      %p209 = scmp.eq.s32.totalorder %s21, 0
      %p210 = por %p208, %p209
      %p211 = scmp.ne.s32.totalorder %s197, %s198
      %p212 = scmp.eq.s32.totalorder %s22, 1
      %p213 = por %p211, %p212
      %p215 = scmp.ne.s32.totalorder %s198, %s214
      %p216 = scmp.eq.s32.totalorder %s22, 0
      %p217 = por %p215, %p216
      %p218 = scmp.le.s32.totalorder 1, %s16
      %p219 = scmp.lt.s32.totalorder %s16, 3
      %p220 = pnand %p218, %p219
      %p221 = pneg %p220
      // Predicated region
      $region9: #{tpu_custom_call.1} parent=5 // pred_check
        _
      $region10: #{tpu_custom_call.1} parent=5 // pred_check_branch
        %223 = sbr.rel (%p220) target = $region12
      $region11: #{tpu_custom_call.1} parent=5 // pred_region
        %s224 = ssub.s32 %s16, 1
        // Predicated region
        $region13: #{tpu_custom_call.1} parent=11 // pred_check
          %p225 = pneg %p77
        $region14: #{tpu_custom_call.1} parent=11 // pred_check_branch
          %227 = sbr.rel (%p225) target = $region16
        $region15: #{tpu_custom_call.1} parent=11 // pred_region
          _
        $region16: #{tpu_custom_call.1} parent=11 // pred_fallthru
          _
        // Predicated region
        $region17: #{tpu_custom_call.1} parent=11 // pred_check
          %p228 = pneg %p98
        $region18: #{tpu_custom_call.1} parent=11 // pred_check_branch
          %230 = sbr.rel (%p228) target = $region20
        $region19: #{tpu_custom_call.1} parent=11 // pred_region
          _
        $region20: #{tpu_custom_call.1} parent=11 // pred_fallthru
          _
        // Predicated region
        $region21: #{tpu_custom_call.1} parent=11 // pred_check
          %p231 = pneg %p119
        $region22: #{tpu_custom_call.1} parent=11 // pred_check_branch
          %233 = sbr.rel (%p231) target = $region24
        $region23: #{tpu_custom_call.1} parent=11 // pred_region
          _
        $region24: #{tpu_custom_call.1} parent=11 // pred_fallthru
          _
        // Predicated region
        $region25: #{tpu_custom_call.1} parent=11 // pred_check
          %p234 = pneg %p140
        $region26: #{tpu_custom_call.1} parent=11 // pred_check_branch
          %236 = sbr.rel (%p234) target = $region28
        $region27: #{tpu_custom_call.1} parent=11 // pred_region
          _
        $region28: #{tpu_custom_call.1} parent=11 // pred_fallthru
          _
        // Predicated region
        $region29: #{tpu_custom_call.1} parent=11 // pred_check
          %p237 = pneg %p161
        $region30: #{tpu_custom_call.1} parent=11 // pred_check_branch
          %239 = sbr.rel (%p237) target = $region32
        $region31: #{tpu_custom_call.1} parent=11 // pred_region
          _
        $region32: #{tpu_custom_call.1} parent=11 // pred_fallthru
          _
        // Predicated region
        $region33: #{tpu_custom_call.1} parent=11 // pred_check
          %p240 = pneg %p182
        $region34: #{tpu_custom_call.1} parent=11 // pred_check_branch
          %242 = sbr.rel (%p240) target = $region36
        $region35: #{tpu_custom_call.1} parent=11 // pred_region
          _
        $region36: #{tpu_custom_call.1} parent=11 // pred_fallthru
          _
      $region12: #{tpu_custom_call.1} parent=5 // pred_fallthru
        _
      %p243 = scmp.lt.s32.totalorder %s16, 2
      // Predicated region
      $region37: #{tpu_custom_call.1} parent=5 // pred_check
        %p244 = pneg %p243
      $region38: #{tpu_custom_call.1} parent=5 // pred_check_branch
        %246 = sbr.rel (%p244) target = $region40
      $region39: #{tpu_custom_call.1} parent=5 // pred_region
        // Predicated region
        $region41: #{tpu_custom_call.1} parent=39 // pred_check
          %p247 = pneg %p50
        $region42: #{tpu_custom_call.1} parent=39 // pred_check_branch
          %249 = sbr.rel (%p247) target = $region44
        $region43: #{tpu_custom_call.1} parent=39 // pred_region
          %p250 = scmp.lt.s32.totalorder %s23, 1
          %s251 = scalar_select %p250, %s23, 1
          %p252 = scmp.lt.s32.totalorder %s24, 0
          %s253 = scalar_select %p252, %s24, 0
          %s254 = smul.addr %s251, 8
          %s255 = sadd.s32 %s253, %s254
          %s256 = smul.addr %s255, 4
          %s257 = scalar_lea.vmem %s0, %s256
        $region44: #{tpu_custom_call.1} parent=39 // pred_fallthru
          _
      $region40: #{tpu_custom_call.1} parent=5 // pred_fallthru
        _
      %p258 = scmp.le.s32.totalorder 1, %s16
      %p259 = scmp.lt.s32.totalorder %s16, 3
      %p260 = pnand %p258, %p259
      %p261 = pneg %p260
      // Predicated region
      $region45: #{tpu_custom_call.1} parent=5 // pred_check
        _
      $region46: #{tpu_custom_call.1} parent=5 // pred_check_branch
        %263 = sbr.rel (%p260) target = $region48
      $region47: #{tpu_custom_call.1} parent=5 // pred_region
        %s264 = ssub.s32 %s16, 1
        %p265 = scmp.lt.s32.totalorder %s25, 1
        %s266 = scalar_select %p265, %s25, 1
        %p267 = scmp.lt.s32.totalorder %s26, 0
        %s268 = scalar_select %p267, %s26, 0
        %s269 = smul.addr %s266, 8
        %s270 = sadd.s32 %s268, %s269
        %s271 = smul.addr %s270, 4
        %s272 = scalar_lea.vmem %s0, %s271
        %p273 = pneg %p56
        %p274 = pneg %p53
        %p275 = pneg %p77
        %p276 = pneg %p74
        %p277 = pneg %p98
        %p278 = pneg %p95
        %p279 = pneg %p119
        %p280 = pneg %p116
        %p281 = pneg %p140
        %p282 = pneg %p137
        %p283 = pneg %p161
        %p284 = pneg %p158
        %p285 = pneg %p182
        %p286 = pneg %p179
        %p287 = pneg %p210
        %p288 = pneg %p207
        %s289 = sand.u32 %s197, 1
        %s290 = scalar_lea.sflag [#allocation3], %s289
        %s291 = sand.u32 %s197, 1
        %s292 = smul.addr %s291, 32
        %s293 = scalar_lea.vmem [#allocation2], %s292
        %p294 = scmp.lt.s32.totalorder %s25, 1
        %s295 = scalar_select %p294, %s25, 1
        %p296 = scmp.lt.s32.totalorder %s26, 0
        %s297 = scalar_select %p296, %s26, 0
        %s298 = smul.addr %s295, 8
        %s299 = sadd.s32 %s297, %s298
        %s300 = smul.addr %s299, 4
        %s301 = scalar_lea.vmem %s0, %s300
        %v303 = vld [vmem:[%s1] sm:$0xf]
        %v304 = vld [vmem:[%s1 + $0x4] sm:$0xf]
        %v305 = vld [vmem:[%s3] sm:$0xf]
        %v306 = vld [vmem:[%s3 + $0x4] sm:$0xf]
        %v307 = vld [vmem:[%s3 + $0x8] sm:$0xf]
        %v308 = vld [vmem:[%s3 + $0xc] sm:$0xf]
        %v309 = vld [vmem:[%s5] sm:$0xf]
        %v310 = vld [vmem:[%s5 + $0x4] sm:$0xf]
        %v311 = vld [vmem:[%s5 + $0x8] sm:$0xf]
        %v312 = vld [vmem:[%s5 + $0xc] sm:$0xf]
        %v313 = vld [vmem:[%s2] sm:$0xff]
        %v314 = vld [vmem:[%s2 + $0x8] sm:$0xff]
        %316 = vset.pattern.permute.xlu0 0
        %317 = vperm.xlu0 %316, %v313
        %v318 = vpop.permute.xlu0 %317
        %321 = vset.pattern.permute.xlu0 0
        %322 = vperm.xlu0 %321, %v314
        %v323 = vpop.permute.xlu0 %322
        %v325 = vld [vmem:[%s4] sm:$0xff]
        %v326 = vld [vmem:[%s4 + $0x8] sm:$0xff]
        %v327 = vld [vmem:[%s4 + $0x10] sm:$0xff]
        %v328 = vld [vmem:[%s4 + $0x18] sm:$0xff]
        %330 = vset.pattern.permute.xlu0 0
        %331 = vperm.xlu0 %330, %v325
        %v332 = vpop.permute.xlu0 %331
        %335 = vset.pattern.permute.xlu0 0
        %336 = vperm.xlu0 %335, %v326
        %v337 = vpop.permute.xlu0 %336
        %340 = vset.pattern.permute.xlu0 0
        %341 = vperm.xlu0 %340, %v327
        %v342 = vpop.permute.xlu0 %341
        %345 = vset.pattern.permute.xlu0 0
        %346 = vperm.xlu0 %345, %v328
        %v347 = vpop.permute.xlu0 %346
        %v349 = vld [vmem:[%s6] sm:$0xff]
        %v350 = vld [vmem:[%s6 + $0x8] sm:$0xff]
        %v351 = vld [vmem:[%s6 + $0x10] sm:$0xff]
        %v352 = vld [vmem:[%s6 + $0x18] sm:$0xff]
        %354 = vset.pattern.permute.xlu0 0
        %355 = vperm.xlu0 %354, %v349
        %v356 = vpop.permute.xlu0 %355
        %359 = vset.pattern.permute.xlu0 0
        %360 = vperm.xlu0 %359, %v350
        %v361 = vpop.permute.xlu0 %360
        %364 = vset.pattern.permute.xlu0 0
        %365 = vperm.xlu0 %364, %v351
        %v366 = vpop.permute.xlu0 %365
        %369 = vset.pattern.permute.xlu0 0
        %370 = vperm.xlu0 %369, %v352
        %v371 = vpop.permute.xlu0 %370
        %v373 = vld [vmem:[%s301] sm:$0xf]
        %v376 = vunpack.c.l.b16 %v303
        %v377 = vunpack.c.l.b16 %v304
        %v378 = vpack.c.b16 %v377, %v376
        %vm379 = vcmask 56320
        %v381 = vsel %vm379, %v378, 0
        %vm383 = vcmask 1042432
        %vm384 = vcmask 1043456
        %v385 = vsel %vm383, 4294967295, 65535
        %v386 = vsel %vm384, %v385, 0
        %v388 = vand.u32 %v373, %v386
        %390 = vmatpush.bf16.msra.mxu0 0
        %391 = vmatpush.bf16.msra.mxu0 0
        %392 = vmatpush.bf16.msra.mxu0 0
        %393 = vmatpush.bf16.msra.mxu0 0
        %394 = vmatpush.bf16.msra.mxu0 0
        %395 = vmatpush.bf16.msra.mxu0 0
        %396 = vmatpush.bf16.msra.mxu0 0
        %397 = vmatpush.bf16.msra.mxu0 %v388
        %398 = vmatmul.bf16.gmra.mxu0 %v381
        %v399 = vpop.f32.mrf.mxu0
        %v400 = vadd.f32 %v318, %v399
        %v401 = vpop.f32.mrf.mxu0
        %v402 = vadd.f32 %v323, %v401
        %403 = vdwg.mxu0
        %v404 = vmax.f32 %v400, 0.0
        %v405 = vmax.f32 %v402, 0.0
        %v406 = vpack.c.bf16 %v405, %v404
        %v411 = vunpack.c.l.b16 %v305
        %v412 = vunpack.c.l.b16 %v306
        %v413 = vunpack.c.l.b16 %v307
        %v414 = vunpack.c.l.b16 %v308
        %v415 = vpack.c.b16 %v412, %v411
        %v416 = vpack.c.b16 %v414, %v413
        %vm417 = vcmask 130048
        %v419 = vsel %vm417, %v415, 0
        %v422 = vsel %vm417, %v416, 0
        %424 = vmatpush.bf16.msra.mxu0 0
        %425 = vmatpush.bf16.msra.mxu0 0
        %426 = vmatpush.bf16.msra.mxu0 0
        %427 = vmatpush.bf16.msra.mxu0 0
        %428 = vmatpush.bf16.msra.mxu0 0
        %429 = vmatpush.bf16.msra.mxu0 0
        %430 = vmatpush.bf16.msra.mxu0 0
        %431 = vmatpush.bf16.msra.mxu0 %v406
        %432 = vmatmul.bf16.gmra.mxu0 %v419
        %v433 = vpop.f32.mrf.mxu0
        %v434 = vadd.f32 %v332, %v433
        %v435 = vpop.f32.mrf.mxu0
        %v436 = vadd.f32 %v337, %v435
        %437 = vmatmul.bf16.gmra.mxu0 %v422
        %v438 = vpop.f32.mrf.mxu0
        %v439 = vadd.f32 %v342, %v438
        %v440 = vpop.f32.mrf.mxu0
        %v441 = vadd.f32 %v347, %v440
        %442 = vdwg.mxu0
        %v443 = vmax.f32 %v434, 0.0
        %v444 = vmax.f32 %v436, 0.0
        %v445 = vmax.f32 %v439, 0.0
        %v446 = vmax.f32 %v441, 0.0
        %s447 = scalar_lea.vmem %s301, 4
        %v448 = vld [vmem:[%s447] sm:$0xf]
        %v450 = vand.u32 %v448, %v386
        %452 = vmatpush.bf16.msra.mxu0 0
        %453 = vmatpush.bf16.msra.mxu0 0
        %454 = vmatpush.bf16.msra.mxu0 0
        %455 = vmatpush.bf16.msra.mxu0 0
        %456 = vmatpush.bf16.msra.mxu0 0
        %457 = vmatpush.bf16.msra.mxu0 0
        %458 = vmatpush.bf16.msra.mxu0 0
        %459 = vmatpush.bf16.msra.mxu0 %v450
        %460 = vmatmul.bf16.gmra.mxu0 %v381
        %v461 = vpop.f32.mrf.mxu0
        %v462 = vadd.f32 %v318, %v461
        %v463 = vpop.f32.mrf.mxu0
        %v464 = vadd.f32 %v323, %v463
        %465 = vdwg.mxu0
        %v466 = vmax.f32 %v462, 0.0
        %v467 = vmax.f32 %v464, 0.0
        %v468 = vpack.c.bf16 %v467, %v466
        %469 = vmatpush.bf16.msra.mxu0 0
        %470 = vmatpush.bf16.msra.mxu0 0
        %471 = vmatpush.bf16.msra.mxu0 0
        %472 = vmatpush.bf16.msra.mxu0 0
        %473 = vmatpush.bf16.msra.mxu0 0
        %474 = vmatpush.bf16.msra.mxu0 0
        %475 = vmatpush.bf16.msra.mxu0 0
        %476 = vmatpush.bf16.msra.mxu0 %v468
        %477 = vmatmul.bf16.gmra.mxu0 %v419
        %v478 = vpop.f32.mrf.mxu0
        %v479 = vadd.f32 %v332, %v478
        %v480 = vpop.f32.mrf.mxu0
        %v481 = vadd.f32 %v337, %v480
        %482 = vmatmul.bf16.gmra.mxu0 %v422
        %v483 = vpop.f32.mrf.mxu0
        %v484 = vadd.f32 %v342, %v483
        %v485 = vpop.f32.mrf.mxu0
        %v486 = vadd.f32 %v347, %v485
        %487 = vdwg.mxu0
        %v488 = vmax.f32 %v479, 0.0
        %v489 = vmax.f32 %v481, 0.0
        %v490 = vmax.f32 %v484, 0.0
        %v491 = vmax.f32 %v486, 0.0
        %v492 = vmax.f32 %v443, %v488
        %v493 = vmax.f32 %v444, %v489
        %v494 = vmax.f32 %v445, %v490
        %v495 = vmax.f32 %v446, %v491
        %s496 = scalar_lea.vmem %s301, 8
        %v497 = vld [vmem:[%s496] sm:$0xf]
        %v499 = vand.u32 %v497, %v386
        %501 = vmatpush.bf16.msra.mxu0 0
        %502 = vmatpush.bf16.msra.mxu0 0
        %503 = vmatpush.bf16.msra.mxu0 0
        %504 = vmatpush.bf16.msra.mxu0 0
        %505 = vmatpush.bf16.msra.mxu0 0
        %506 = vmatpush.bf16.msra.mxu0 0
        %507 = vmatpush.bf16.msra.mxu0 0
        %508 = vmatpush.bf16.msra.mxu0 %v499
        %509 = vmatmul.bf16.gmra.mxu0 %v381
        %v510 = vpop.f32.mrf.mxu0
        %v511 = vadd.f32 %v318, %v510
        %v512 = vpop.f32.mrf.mxu0
        %v513 = vadd.f32 %v323, %v512
        %514 = vdwg.mxu0
        %v515 = vmax.f32 %v511, 0.0
        %v516 = vmax.f32 %v513, 0.0
        %v517 = vpack.c.bf16 %v516, %v515
        %518 = vmatpush.bf16.msra.mxu0 0
        %519 = vmatpush.bf16.msra.mxu0 0
        %520 = vmatpush.bf16.msra.mxu0 0
        %521 = vmatpush.bf16.msra.mxu0 0
        %522 = vmatpush.bf16.msra.mxu0 0
        %523 = vmatpush.bf16.msra.mxu0 0
        %524 = vmatpush.bf16.msra.mxu0 0
        %525 = vmatpush.bf16.msra.mxu0 %v517
        %526 = vmatmul.bf16.gmra.mxu0 %v419
        %v527 = vpop.f32.mrf.mxu0
        %v528 = vadd.f32 %v332, %v527
        %v529 = vpop.f32.mrf.mxu0
        %v530 = vadd.f32 %v337, %v529
        %531 = vmatmul.bf16.gmra.mxu0 %v422
        %v532 = vpop.f32.mrf.mxu0
        %v533 = vadd.f32 %v342, %v532
        %v534 = vpop.f32.mrf.mxu0
        %v535 = vadd.f32 %v347, %v534
        %536 = vdwg.mxu0
        %v537 = vmax.f32 %v528, 0.0
        %v538 = vmax.f32 %v530, 0.0
        %v539 = vmax.f32 %v533, 0.0
        %v540 = vmax.f32 %v535, 0.0
        %v541 = vmax.f32 %v492, %v537
        %v542 = vmax.f32 %v493, %v538
        %v543 = vmax.f32 %v494, %v539
        %v544 = vmax.f32 %v495, %v540
        %s545 = scalar_lea.vmem %s301, 12
        %v546 = vld [vmem:[%s545] sm:$0xf]
        %v548 = vand.u32 %v546, %v386
        %550 = vmatpush.bf16.msra.mxu0 0
        %551 = vmatpush.bf16.msra.mxu0 0
        %552 = vmatpush.bf16.msra.mxu0 0
        %553 = vmatpush.bf16.msra.mxu0 0
        %554 = vmatpush.bf16.msra.mxu0 0
        %555 = vmatpush.bf16.msra.mxu0 0
        %556 = vmatpush.bf16.msra.mxu0 0
        %557 = vmatpush.bf16.msra.mxu0 %v548
        %558 = vmatmul.bf16.gmra.mxu0 %v381
        %v559 = vpop.f32.mrf.mxu0
        %v560 = vadd.f32 %v318, %v559
        %v561 = vpop.f32.mrf.mxu0
        %v562 = vadd.f32 %v323, %v561
        %563 = vdwg.mxu0
        %v564 = vmax.f32 %v560, 0.0
        %v565 = vmax.f32 %v562, 0.0
        %v566 = vpack.c.bf16 %v565, %v564
        %567 = vmatpush.bf16.msra.mxu0 0
        %568 = vmatpush.bf16.msra.mxu0 0
        %569 = vmatpush.bf16.msra.mxu0 0
        %570 = vmatpush.bf16.msra.mxu0 0
        %571 = vmatpush.bf16.msra.mxu0 0
        %572 = vmatpush.bf16.msra.mxu0 0
        %573 = vmatpush.bf16.msra.mxu0 0
        %574 = vmatpush.bf16.msra.mxu0 %v566
        %575 = vmatmul.bf16.gmra.mxu0 %v419
        %v576 = vpop.f32.mrf.mxu0
        %v577 = vadd.f32 %v332, %v576
        %v578 = vpop.f32.mrf.mxu0
        %v579 = vadd.f32 %v337, %v578
        %580 = vmatmul.bf16.gmra.mxu0 %v422
        %v581 = vpop.f32.mrf.mxu0
        %v582 = vadd.f32 %v342, %v581
        %v583 = vpop.f32.mrf.mxu0
        %v584 = vadd.f32 %v347, %v583
        %585 = vdwg.mxu0
        %v586 = vmax.f32 %v577, 0.0
        %v587 = vmax.f32 %v579, 0.0
        %v588 = vmax.f32 %v582, 0.0
        %v589 = vmax.f32 %v584, 0.0
        %v590 = vmax.f32 %v541, %v586
        %v591 = vmax.f32 %v542, %v587
        %v592 = vmax.f32 %v543, %v588
        %v593 = vmax.f32 %v544, %v589
        %s594 = scalar_lea.vmem %s301, 16
        %v595 = vld [vmem:[%s594] sm:$0xf]
        %v597 = vand.u32 %v595, %v386
        %599 = vmatpush.bf16.msra.mxu0 0
        %600 = vmatpush.bf16.msra.mxu0 0
        %601 = vmatpush.bf16.msra.mxu0 0
        %602 = vmatpush.bf16.msra.mxu0 0
        %603 = vmatpush.bf16.msra.mxu0 0
        %604 = vmatpush.bf16.msra.mxu0 0
        %605 = vmatpush.bf16.msra.mxu0 0
        %606 = vmatpush.bf16.msra.mxu0 %v597
        %607 = vmatmul.bf16.gmra.mxu0 %v381
        %v608 = vpop.f32.mrf.mxu0
        %v609 = vadd.f32 %v318, %v608
        %v610 = vpop.f32.mrf.mxu0
        %v611 = vadd.f32 %v323, %v610
        %612 = vdwg.mxu0
        %v613 = vmax.f32 %v609, 0.0
        %v614 = vmax.f32 %v611, 0.0
        %v615 = vpack.c.bf16 %v614, %v613
        %616 = vmatpush.bf16.msra.mxu0 0
        %617 = vmatpush.bf16.msra.mxu0 0
        %618 = vmatpush.bf16.msra.mxu0 0
        %619 = vmatpush.bf16.msra.mxu0 0
        %620 = vmatpush.bf16.msra.mxu0 0
        %621 = vmatpush.bf16.msra.mxu0 0
        %622 = vmatpush.bf16.msra.mxu0 0
        %623 = vmatpush.bf16.msra.mxu0 %v615
        %624 = vmatmul.bf16.gmra.mxu0 %v419
        %v625 = vpop.f32.mrf.mxu0
        %v626 = vadd.f32 %v332, %v625
        %v627 = vpop.f32.mrf.mxu0
        %v628 = vadd.f32 %v337, %v627
        %629 = vmatmul.bf16.gmra.mxu0 %v422
        %v630 = vpop.f32.mrf.mxu0
        %v631 = vadd.f32 %v342, %v630
        %v632 = vpop.f32.mrf.mxu0
        %v633 = vadd.f32 %v347, %v632
        %634 = vdwg.mxu0
        %v635 = vmax.f32 %v626, 0.0
        %v636 = vmax.f32 %v628, 0.0
        %v637 = vmax.f32 %v631, 0.0
        %v638 = vmax.f32 %v633, 0.0
        %v639 = vmax.f32 %v590, %v635
        %v640 = vmax.f32 %v591, %v636
        %v641 = vmax.f32 %v592, %v637
        %v642 = vmax.f32 %v593, %v638
        %s643 = scalar_lea.vmem %s301, 20
        %v644 = vld [vmem:[%s643] sm:$0xf]
        %v646 = vand.u32 %v644, %v386
        %648 = vmatpush.bf16.msra.mxu0 0
        %649 = vmatpush.bf16.msra.mxu0 0
        %650 = vmatpush.bf16.msra.mxu0 0
        %651 = vmatpush.bf16.msra.mxu0 0
        %652 = vmatpush.bf16.msra.mxu0 0
        %653 = vmatpush.bf16.msra.mxu0 0
        %654 = vmatpush.bf16.msra.mxu0 0
        %655 = vmatpush.bf16.msra.mxu0 %v646
        %656 = vmatmul.bf16.gmra.mxu0 %v381
        %v657 = vpop.f32.mrf.mxu0
        %v658 = vadd.f32 %v318, %v657
        %v659 = vpop.f32.mrf.mxu0
        %v660 = vadd.f32 %v323, %v659
        %661 = vdwg.mxu0
        %v662 = vmax.f32 %v658, 0.0
        %v663 = vmax.f32 %v660, 0.0
        %v664 = vpack.c.bf16 %v663, %v662
        %665 = vmatpush.bf16.msra.mxu0 0
        %666 = vmatpush.bf16.msra.mxu0 0
        %667 = vmatpush.bf16.msra.mxu0 0
        %668 = vmatpush.bf16.msra.mxu0 0
        %669 = vmatpush.bf16.msra.mxu0 0
        %670 = vmatpush.bf16.msra.mxu0 0
        %671 = vmatpush.bf16.msra.mxu0 0
        %672 = vmatpush.bf16.msra.mxu0 %v664
        %673 = vmatmul.bf16.gmra.mxu0 %v419
        %v674 = vpop.f32.mrf.mxu0
        %v675 = vadd.f32 %v332, %v674
        %v676 = vpop.f32.mrf.mxu0
        %v677 = vadd.f32 %v337, %v676
        %678 = vmatmul.bf16.gmra.mxu0 %v422
        %v679 = vpop.f32.mrf.mxu0
        %v680 = vadd.f32 %v342, %v679
        %v681 = vpop.f32.mrf.mxu0
        %v682 = vadd.f32 %v347, %v681
        %683 = vdwg.mxu0
        %v684 = vmax.f32 %v675, 0.0
        %v685 = vmax.f32 %v677, 0.0
        %v686 = vmax.f32 %v680, 0.0
        %v687 = vmax.f32 %v682, 0.0
        %v688 = vmax.f32 %v639, %v684
        %v689 = vmax.f32 %v640, %v685
        %v690 = vmax.f32 %v641, %v686
        %v691 = vmax.f32 %v642, %v687
        %s692 = scalar_lea.vmem %s301, 24
        %v693 = vld [vmem:[%s692] sm:$0xf]
        %v695 = vand.u32 %v693, %v386
        %697 = vmatpush.bf16.msra.mxu0 0
        %698 = vmatpush.bf16.msra.mxu0 0
        %699 = vmatpush.bf16.msra.mxu0 0
        %700 = vmatpush.bf16.msra.mxu0 0
        %701 = vmatpush.bf16.msra.mxu0 0
        %702 = vmatpush.bf16.msra.mxu0 0
        %703 = vmatpush.bf16.msra.mxu0 0
        %704 = vmatpush.bf16.msra.mxu0 %v695
        %705 = vmatmul.bf16.gmra.mxu0 %v381
        %v706 = vpop.f32.mrf.mxu0
        %v707 = vadd.f32 %v318, %v706
        %v708 = vpop.f32.mrf.mxu0
        %v709 = vadd.f32 %v323, %v708
        %710 = vdwg.mxu0
        %v711 = vmax.f32 %v707, 0.0
        %v712 = vmax.f32 %v709, 0.0
        %v713 = vpack.c.bf16 %v712, %v711
        %714 = vmatpush.bf16.msra.mxu0 0
        %715 = vmatpush.bf16.msra.mxu0 0
        %716 = vmatpush.bf16.msra.mxu0 0
        %717 = vmatpush.bf16.msra.mxu0 0
        %718 = vmatpush.bf16.msra.mxu0 0
        %719 = vmatpush.bf16.msra.mxu0 0
        %720 = vmatpush.bf16.msra.mxu0 0
        %721 = vmatpush.bf16.msra.mxu0 %v713
        %722 = vmatmul.bf16.gmra.mxu0 %v419
        %v723 = vpop.f32.mrf.mxu0
        %v724 = vadd.f32 %v332, %v723
        %v725 = vpop.f32.mrf.mxu0
        %v726 = vadd.f32 %v337, %v725
        %727 = vmatmul.bf16.gmra.mxu0 %v422
        %v728 = vpop.f32.mrf.mxu0
        %v729 = vadd.f32 %v342, %v728
        %v730 = vpop.f32.mrf.mxu0
        %v731 = vadd.f32 %v347, %v730
        %732 = vdwg.mxu0
        %v733 = vmax.f32 %v724, 0.0
        %v734 = vmax.f32 %v726, 0.0
        %v735 = vmax.f32 %v729, 0.0
        %v736 = vmax.f32 %v731, 0.0
        %v737 = vmax.f32 %v688, %v733
        %v738 = vmax.f32 %v689, %v734
        %v739 = vmax.f32 %v690, %v735
        %v740 = vmax.f32 %v691, %v736
        %s741 = scalar_lea.vmem %s301, 28
        %v742 = vld [vmem:[%s741] sm:$0xf]
        %v744 = vand.u32 %v742, %v386
        %746 = vmatpush.bf16.msra.mxu0 0
        %747 = vmatpush.bf16.msra.mxu0 0
        %748 = vmatpush.bf16.msra.mxu0 0
        %749 = vmatpush.bf16.msra.mxu0 0
        %750 = vmatpush.bf16.msra.mxu0 0
        %751 = vmatpush.bf16.msra.mxu0 0
        %752 = vmatpush.bf16.msra.mxu0 0
        %753 = vmatpush.bf16.msra.mxu0 %v744
        %754 = vmatmul.bf16.gmra.mxu0 %v381
        %v755 = vpop.f32.mrf.mxu0
        %v756 = vadd.f32 %v318, %v755
        %v757 = vpop.f32.mrf.mxu0
        %v758 = vadd.f32 %v323, %v757
        %759 = vdwg.mxu0
        %v760 = vmax.f32 %v756, 0.0
        %v761 = vmax.f32 %v758, 0.0
        %v762 = vpack.c.bf16 %v761, %v760
        %763 = vmatpush.bf16.msra.mxu0 0
        %764 = vmatpush.bf16.msra.mxu0 0
        %765 = vmatpush.bf16.msra.mxu0 0
        %766 = vmatpush.bf16.msra.mxu0 0
        %767 = vmatpush.bf16.msra.mxu0 0
        %768 = vmatpush.bf16.msra.mxu0 0
        %769 = vmatpush.bf16.msra.mxu0 0
        %770 = vmatpush.bf16.msra.mxu0 %v762
        %771 = vmatmul.bf16.gmra.mxu0 %v419
        %v772 = vpop.f32.mrf.mxu0
        %v773 = vadd.f32 %v332, %v772
        %v774 = vpop.f32.mrf.mxu0
        %v775 = vadd.f32 %v337, %v774
        %776 = vmatmul.bf16.gmra.mxu0 %v422
        %v777 = vpop.f32.mrf.mxu0
        %v778 = vadd.f32 %v342, %v777
        %v779 = vpop.f32.mrf.mxu0
        %v780 = vadd.f32 %v347, %v779
        %781 = vdwg.mxu0
        %v782 = vmax.f32 %v773, 0.0
        %v783 = vmax.f32 %v775, 0.0
        %v784 = vmax.f32 %v778, 0.0
        %v785 = vmax.f32 %v780, 0.0
        %v786 = vmax.f32 %v737, %v782
        %v787 = vmax.f32 %v738, %v783
        %v788 = vmax.f32 %v739, %v784
        %v789 = vmax.f32 %v740, %v785
        %v790 = vpack.c.bf16 %v787, %v786
        %v791 = vpack.c.bf16 %v789, %v788
        %v796 = vunpack.c.l.b16 %v309
        %v797 = vunpack.c.l.b16 %v310
        %v798 = vunpack.c.l.b16 %v311
        %v799 = vunpack.c.l.b16 %v312
        %v800 = vpack.c.b16 %v797, %v796
        %v801 = vpack.c.b16 %v799, %v798
        %vm802 = vcmask 261120
        %v804 = vsel %vm802, %v800, 0
        %v807 = vsel %vm802, %v801, 0
        %809 = vmatpush.bf16.msra.mxu0 0
        %810 = vmatpush.bf16.msra.mxu0 0
        %811 = vmatpush.bf16.msra.mxu0 0
        %812 = vmatpush.bf16.msra.mxu0 0
        %813 = vmatpush.bf16.msra.mxu0 0
        %814 = vmatpush.bf16.msra.mxu0 0
        %815 = vmatpush.bf16.msra.mxu0 %v791
        %816 = vmatpush.bf16.msra.mxu0 %v790
        %817 = vmatmul.bf16.gmra.mxu0 %v804
        %v818 = vpop.f32.mrf.mxu0
        %v819 = vadd.f32 %v356, %v818
        %v820 = vpop.f32.mrf.mxu0
        %v821 = vadd.f32 %v361, %v820
        %822 = vmatmul.bf16.gmra.mxu0 %v807
        %v823 = vpop.f32.mrf.mxu0
        %v824 = vadd.f32 %v366, %v823
        %v825 = vpop.f32.mrf.mxu0
        %v826 = vadd.f32 %v371, %v825
        %827 = vdwg.mxu0
        %v828 = vmax.f32 %v819, 0.0
        %v829 = vmax.f32 %v821, 0.0
        %v830 = vmax.f32 %v824, 0.0
        %v831 = vmax.f32 %v826, 0.0
        %832 = vst [vmem:[%s293] sm:$0xff] %v828
        %833 = vst [vmem:[%s293 + $0x8] sm:$0xff] %v829
        %834 = vst [vmem:[%s293 + $0x10] sm:$0xff] %v830
        %835 = vst [vmem:[%s293 + $0x18] sm:$0xff] %v831
        %s836 = sand.u32 %s197, 1
        %s837 = scalar_lea.sflag [#allocation3], %s836
        %s838 = sand.u32 %s197, 1
        %s839 = smul.addr %s838, 32
        %s840 = scalar_lea.vmem [#allocation2], %s839
        // Predicated region
        $region49: #{tpu_custom_call.1} parent=47 // pred_check
          %p841 = pneg %p207
        $region50: #{tpu_custom_call.1} parent=47 // pred_check_branch
          %843 = sbr.rel (%p841) target = $region52
        $region51: #{tpu_custom_call.1} parent=47 // pred_region
          %845 = vsyncadd %s837, 0
          %s846 = smul.addr %s25, 4
          %s847 = sadd.s32 %s26, %s846
          %s848 = smul.addr %s847, 8
          %s849 = scalar_lea.hbm %s7, %s848
          %s850 = sshll.u32 %s840, 4
          %s851 = int_to_ptr.vmem [resolvable:$true] %s850
          %s852 = sshll.u32 %s849, 4
          %s853 = int_to_ptr.hbm [resolvable:$true] %s852
          %858 = dma.vmem_to_hbm [thread:$0]  %s851, 512, %s853, %s837, 128, 128, 8
        $region52: #{tpu_custom_call.1} parent=47 // pred_fallthru
          _
      $region48: #{tpu_custom_call.1} parent=5 // pred_fallthru
        _
      %p859 = scmp.le.s32.totalorder 2, %s16
      // Predicated region
      $region53: #{tpu_custom_call.1} parent=5 // pred_check
        %p860 = pneg %p859
      $region54: #{tpu_custom_call.1} parent=5 // pred_check_branch
        %862 = sbr.rel (%p860) target = $region56
      $region55: #{tpu_custom_call.1} parent=5 // pred_region
        %s863 = ssub.s32 %s16, 2
        // Predicated region
        $region57: #{tpu_custom_call.1} parent=55 // pred_check
          %p864 = pneg %p213
        $region58: #{tpu_custom_call.1} parent=55 // pred_check_branch
          %866 = sbr.rel (%p864) target = $region60
        $region59: #{tpu_custom_call.1} parent=55 // pred_region
          %s867 = sand.u32 %s198, 1
          %s868 = scalar_lea.sflag [#allocation3], %s867
          %s869 = sand.u32 %s198, 1
          %s870 = smul.addr %s869, 32
          %s871 = scalar_lea.vmem [#allocation2], %s870
          %873 = dma.done %s868, 512
        $region60: #{tpu_custom_call.1} parent=55 // pred_fallthru
          _
      $region56: #{tpu_custom_call.1} parent=5 // pred_fallthru
        _
    $region6: #{tpu_custom_call.1} parent=1 // loop_footer
      %s20 = sadd.s32 1, %s16
    $region7: #{tpu_custom_call.1} parent=1 // loop_footer_branch
      %15 = sbr.rel target = $region3
    $region8: #{tpu_custom_call.1} parent=1 // loop_exit
      _
    %874 = vsyncpa [#allocation3], 1
    %s875 = scalar_lea.sflag [#allocation3], 1
    %876 = vsyncpa %s875, 1

</llo_original>
